<compile_context>
chip_gen: v7x
topology: tpu7x:2x2x1
jax: 0.10.0
libtpu: 0.0.40
codegen_flags: <defaults>
</compile_context>

<pallas_src>
import functools

import jax
import jax.numpy as jnp
from jax import lax
from jax.experimental import pallas as pl
from jax.experimental.pallas import tpu as pltpu


def _lm_criterion_kernel(x_ref, tgt_ref, msk_ref, out_ref, *, n_rows):
    """One (row-block, vocab-block) grid step.

    x_ref   : (tM, tV)  VMEM, caller dtype  -- log-prob tile
    tgt_ref : (tM, 1)   VMEM, int32         -- targets for this row block
    msk_ref : (tM, 1)   VMEM, float32       -- mask for this row block
    out_ref : (tM, 1)   VMEM, float32       -- per-row partial (-logp * mask),
                                               resident across the vocab axis
    """
    m = pl.program_id(0)          # row-block id     ("parallel")
    v = pl.program_id(1)          # vocab-block id   ("arbitrary", innermost)

    @pl.when(v == 0)
    def _init():
        out_ref[...] = jnp.zeros_like(out_ref)

    logp = x_ref[...]                                   # (tM, tV), native dtype
    tm, tv = logp.shape

    # Local target column within this vocab tile. Targets belonging to other
    # tiles become negative or >= tv and never match the lane iota; padded
    # vocab columns of a ragged boundary block have local ids that can never
    # equal a valid local target, so they are never selected either.
    local_tgt = tgt_ref[...] - v * tv                   # (tM, 1) int32
    col = lax.broadcasted_iota(jnp.int32, (tm, tv), 1)  # (tM, tV)
    onehot = col == local_tgt

    sel = jnp.where(onehot, logp, jnp.zeros_like(logp))
    # At most one nonzero per row inside a vocab tile -> native-dtype sum is
    # exact; widen only the per-row picked value to f32 for accumulation.
    picked = jnp.sum(sel, axis=1, keepdims=True).astype(jnp.float32)   # (tM, 1)

    # Guard rows of a (possibly padded) boundary row block: padded rows may
    # carry garbage logp / target / mask (even NaN), so select 0 for them.
    row_ids = m * tm + lax.broadcasted_iota(jnp.int32, (tm, 1), 0)
    valid = row_ids < n_rows
    out_ref[...] += jnp.where(valid, -picked * msk_ref[...], 0.0)


def language_model_criterion(inp, target, mask, *, tile_rows=256, tile_vocab=8192,
                             vmem_limit_bytes=48 * 1024 * 1024):
    """JAX wrapper. inp: (B, T, V) float (f32 or bf16); target: (B, T') int;
    mask: (B, T') float. Returns the scalar mean NLL over masked positions."""
    B, T, V = inp.shape
    n_rows = B * T

    # PyTorch-style truncation to the input time length.
    target = target[:, :T].astype(jnp.int32)
    mask = mask[:, :T].astype(jnp.float32)

    # Denominator: tiny O(B*T) reduction done outside the vocab-tiled kernel
    # (so it is counted exactly once regardless of the number of vocab blocks).
    den = jnp.sum(mask)

    x2d = inp.reshape(n_rows, V)            # keep the caller dtype (bf16 ok)
    tgt2d = target.reshape(n_rows, 1)
    msk2d = mask.reshape(n_rows, 1)

    # Tile sizes: full extent if small, otherwise (8,128)-aligned tiles with
    # cdiv grids; boundary blocks are handled in-kernel.
    tm = n_rows if n_rows <= tile_rows else tile_rows        # mult of 8 (256)
    tv = V if V <= tile_vocab else tile_vocab                # mult of 128

    n_row_blocks = pl.cdiv(n_rows, tm)
    n_vocab_blocks = pl.cdiv(V, tv)

    kernel = functools.partial(_lm_criterion_kernel, n_rows=n_rows)

    itemsize = jnp.dtype(inp.dtype).itemsize
    cost = pl.CostEstimate(
        flops=3 * n_rows * V,                                  # cmp + sel + add
        transcendentals=0,
        bytes_accessed=n_rows * V * itemsize + n_rows * 12,    # logp + tgt/msk/out
    )

    partials = pl.pallas_call(
        kernel,
        out_shape=jax.ShapeDtypeStruct((n_row_blocks * tm, 1), jnp.float32),
        grid_spec=pltpu.PrefetchScalarGridSpec(
            num_scalar_prefetch=0,
            grid=(n_row_blocks, n_vocab_blocks),
            in_specs=[
                pl.BlockSpec((tm, tv), lambda m, v: (m, v)),   # log-prob tile
                pl.BlockSpec((tm, 1), lambda m, v: (m, 0)),    # targets (row block)
                pl.BlockSpec((tm, 1), lambda m, v: (m, 0)),    # mask (row block)
            ],
            out_specs=pl.BlockSpec((tm, 1), lambda m, v: (m, 0)),
        ),
        compiler_params=pltpu.CompilerParams(
            dimension_semantics=("parallel", "arbitrary"),
            vmem_limit_bytes=vmem_limit_bytes,
        ),
        cost_estimate=cost,
    )(x2d, tgt2d, msk2d)

    num = jnp.sum(partials)
    # NOTE: division by zero when sum(mask) == 0 matches the PyTorch semantics.
    return num / den


def _reference(inp, target, mask):
    B, T, V = inp.shape
    tgt_t = target[:, :T]
    msk_t = mask[:, :T].astype(jnp.float32)
    gathered = jnp.take_along_axis(inp.astype(jnp.float32),
                                   tgt_t[:, :, None].astype(jnp.int32), axis=2)[..., 0]
    return jnp.sum(-gathered * msk_t) / jnp.sum(msk_t)


if __name__ == "__main__":
    # ---- check 1: small f32 case (single block) with time truncation -------
    B, T, V = 2, 8, 32
    T_full = 12

    key = jax.random.PRNGKey(0)
    k_inp, k_tgt = jax.random.split(key, 2)

    logits = jax.random.normal(k_inp, (B, T, V), dtype=jnp.float32)
    inp = jax.nn.log_softmax(logits, axis=-1)
    target = jax.random.randint(k_tgt, (B, T_full), 0, V, dtype=jnp.int32)
    lengths = jnp.array([6, 8], dtype=jnp.int32)
    mask = (jnp.arange(T_full)[None, :] < lengths[:, None]).astype(jnp.float32)

    loss = jax.block_until_ready(language_model_criterion(inp, target, mask))
    ref = _reference(inp, target, mask)
    assert jnp.allclose(loss, ref, rtol=1e-5, atol=1e-6), (loss, ref)

    # ---- check 2: bf16 input path (half the HBM bytes streamed) ------------
    inp_bf16 = inp.astype(jnp.bfloat16)
    loss_bf16 = jax.block_until_ready(language_model_criterion(inp_bf16, target, mask))
    ref_bf16 = _reference(inp_bf16, target, mask)
    assert jnp.allclose(loss_bf16, ref_bf16, rtol=1e-4, atol=1e-5), (loss_bf16, ref_bf16)

    # ---- check 3: force multi-block grid with ragged edges ------------------
    B2, T2, V2 = 3, 5, 192          # B*T = 15 (not /8), V = 192 (not /128)
    k1, k2 = jax.random.split(jax.random.PRNGKey(1))
    logits2 = jax.random.normal(k1, (B2, T2, V2), dtype=jnp.float32)
    inp2 = jax.nn.log_softmax(logits2, axis=-1)
    target2 = jax.random.randint(k2, (B2, T2), 0, V2, dtype=jnp.int32)
    mask2 = jnp.ones((B2, T2), jnp.float32).at[2, 3:].set(0.0)
    loss2 = jax.block_until_ready(
        language_model_criterion(inp2, target2, mask2, tile_rows=8, tile_vocab=128))
    ref2 = _reference(inp2, target2, mask2)
    assert jnp.allclose(loss2, ref2, rtol=1e-5, atol=1e-6), (loss2, ref2)

    print("KERNEL_OK")
</pallas_src>

<mosaic_0001>
module attributes {stable_mosaic.version = 11 : i64} {
  func.func @_lm_criterion_kernel(%arg0: i32, %arg1: i32, %arg2: memref<16x32xf32, #tpu.memory_space<vmem>>, %arg3: memref<16x1xi32, #tpu.memory_space<vmem>>, %arg4: memref<16x1xf32, #tpu.memory_space<vmem>>, %arg5: memref<16x1xf32, #tpu.memory_space<vmem>>) attributes {dimension_semantics = [#tpu.dimension_semantics<parallel>, #tpu.dimension_semantics<arbitrary>], iteration_bounds = array<i64: 1, 1>, scalar_prefetch = 0 : i64, scratch_operands = 0 : i64, tpu.core_type = #tpu.core_type<tc>, window_params = [{transform_indices = @transform_0, window_bounds = array<i64: 16, 32>}, {transform_indices = @transform_1, window_bounds = array<i64: 16, 1>}, {transform_indices = @transform_2, window_bounds = array<i64: 16, 1>}, {transform_indices = @transform_3, window_bounds = array<i64: 16, 1>}]} {
    %c0_i32 = arith.constant 0 : i32
    %0 = arith.cmpi eq, %arg1, %c0_i32 : i32
    %1 = arith.extui %0 : i1 to i32
    %c0_i32_0 = arith.constant 0 : i32
    %2 = arith.cmpi ne, %1, %c0_i32_0 : i32
    scf.if %2 {
      %cst_14 = arith.constant 0.000000e+00 : f32
      %30 = vector.broadcast %cst_14 : f32 to vector<16x1xf32>
      %c0_15 = arith.constant 0 : index
      %c0_16 = arith.constant 0 : index
      %31 = vector.load %arg5[%c0_15, %c0_16] : memref<16x1xf32, #tpu.memory_space<vmem>>, vector<16x1xf32>
      tpu.vector_store %arg5[%c0_15, %c0_16], %30 {strides = array<i32>} : memref<16x1xf32, #tpu.memory_space<vmem>>, vector<16x1xf32>,
    } else {
    }
    %c0 = arith.constant 0 : index
    %c0_1 = arith.constant 0 : index
    %3 = vector.load %arg2[%c0, %c0_1] : memref<16x32xf32, #tpu.memory_space<vmem>>, vector<16x32xf32>
    %c0_2 = arith.constant 0 : index
    %c0_3 = arith.constant 0 : index
    %4 = vector.load %arg3[%c0_2, %c0_3] : memref<16x1xi32, #tpu.memory_space<vmem>>, vector<16x1xi32>
    %c32_i32 = arith.constant 32 : i32
    %5 = arith.muli %arg1, %c32_i32 : i32
    %6 = vector.broadcast %5 : i32 to vector<16x1xi32>
    %7 = arith.subi %4, %6 : vector<16x1xi32>
    %8 = tpu.iota {dimensions = array<i32: 1>} : vector<16x32xi32>
    %9 = vector.broadcast %7 : vector<16x1xi32> to vector<16x32xi32>
    %10 = arith.cmpi eq, %8, %9 : vector<16x32xi32>
    %cst = arith.constant 0.000000e+00 : f32
    %11 = vector.broadcast %cst : f32 to vector<16x32xf32>
    %12 = arith.select %10, %3, %11 : vector<16x32xi1>, vector<16x32xf32>
    %cst_4 = arith.constant dense<0.000000e+00> : vector<16xf32>
    %13 = vector.multi_reduction <add>, %12, %cst_4 [1] : vector<16x32xf32> to vector<16xf32>
    %14 = vector.shape_cast %13 : vector<16xf32> to vector<16x1xf32>
    %c16_i32 = arith.constant 16 : i32
    %15 = arith.muli %arg0, %c16_i32 : i32
    %16 = tpu.iota {dimensions = array<i32: 0>} : vector<16x1xi32>
    %17 = vector.broadcast %15 : i32 to vector<16x1xi32>
    %18 = arith.addi %17, %16 : vector<16x1xi32>
    %c16_i32_5 = arith.constant 16 : i32
    %19 = vector.broadcast %c16_i32_5 : i32 to vector<16x1xi32>
    %20 = arith.cmpi slt, %18, %19 : vector<16x1xi32>
    %c0_6 = arith.constant 0 : index
    %c0_7 = arith.constant 0 : index
    %21 = vector.load %arg5[%c0_6, %c0_7] : memref<16x1xf32, #tpu.memory_space<vmem>>, vector<16x1xf32>
    %cst_8 = arith.constant 0.000000e+00 : f32
    %22 = vector.broadcast %cst_8 : f32 to vector<16x1xf32>
    %23 = arith.subf %22, %14 : vector<16x1xf32>
    %c0_9 = arith.constant 0 : index
    %c0_10 = arith.constant 0 : index
    %24 = vector.load %arg4[%c0_9, %c0_10] : memref<16x1xf32, #tpu.memory_space<vmem>>, vector<16x1xf32>
    %25 = arith.mulf %23, %24 : vector<16x1xf32>
    %cst_11 = arith.constant 0.000000e+00 : f32
    %26 = vector.broadcast %cst_11 : f32 to vector<16x1xf32>
    %27 = arith.select %20, %25, %26 : vector<16x1xi1>, vector<16x1xf32>
    %28 = arith.addf %21, %27 : vector<16x1xf32>
    %c0_12 = arith.constant 0 : index
    %c0_13 = arith.constant 0 : index
    %29 = vector.load %arg5[%c0_12, %c0_13] : memref<16x1xf32, #tpu.memory_space<vmem>>, vector<16x1xf32>
    tpu.vector_store %arg5[%c0_12, %c0_13], %28 {strides = array<i32>} : memref<16x1xf32, #tpu.memory_space<vmem>>, vector<16x1xf32>,
    return
  }
  func.func @transform_0(%arg0: i32, %arg1: i32) -> (i32, i32) {
    %c0_i32 = arith.constant 0 : i32
    return %arg0, %arg1 : i32, i32
  }
  func.func @transform_1(%arg0: i32, %arg1: i32) -> (i32, i32) {
    %c0_i32 = arith.constant 0 : i32
    %c0_i32_0 = arith.constant 0 : i32
    return %arg0, %c0_i32 : i32, i32
  }
  func.func @transform_2(%arg0: i32, %arg1: i32) -> (i32, i32) {
    %c0_i32 = arith.constant 0 : i32
    %c0_i32_0 = arith.constant 0 : i32
    return %arg0, %c0_i32 : i32, i32
  }
  func.func @transform_3(%arg0: i32, %arg1: i32) -> (i32, i32) {
    %c0_i32 = arith.constant 0 : i32
    %c0_i32_0 = arith.constant 0 : i32
    return %arg0, %c0_i32 : i32, i32
  }
}

</mosaic_0001>

<llo_original>
// kernel: tpu_custom_call.1
$region0: #{tpu_custom_call.1}
  #allocation0 [shape = 'u32[]', space=smem, size = 0x4, offset = 0x4, fixed_abs, tag = 'smem constant byte address 0x4 - core index']
  #allocation1 [shape = 'u32[144,128]{1,0:T(1,128)}', space=vmem, size = 0x12000, scoped, tag = 'internal scratch']
  %s0 = inlined_call_operand.vmem [shape: f32[16,32], index: 0, kind: input, shape index: {}]
  %s1 = inlined_call_operand.vmem [shape: s32[16,1], index: 1, kind: input, shape index: {}]
  %s2 = inlined_call_operand.vmem [shape: f32[16,1], index: 2, kind: input, shape index: {}]
  %s3 = inlined_call_operand.vmem [shape: f32[16,1], index: 3, kind: output, shape index: {}]
  %s4 = sld [smem:[#allocation0]]
  $region26: #{tpu_custom_call.1} parent=0
    _
  %s6 = ssub.s32 1, %s4
  %s7 = scalar_select 0, %s6, %s4
  // Predicated region
  $region2: #{tpu_custom_call.1} parent=0 // pred_check
    _
  $region3: #{tpu_custom_call.1} parent=0 // pred_check_branch
    %9 = sbr.rel (0) target = $region5
  $region4: #{tpu_custom_call.1} parent=0 // pred_region
    _
  $region5: #{tpu_custom_call.1} parent=0 // pred_fallthru
    _
  // Predicated region
  $region6: #{tpu_custom_call.1} parent=0 // pred_check
    _
  $region7: #{tpu_custom_call.1} parent=0 // pred_check_branch
    %11 = sbr.rel (0) target = $region9
  $region8: #{tpu_custom_call.1} parent=0 // pred_region
    _
  $region9: #{tpu_custom_call.1} parent=0 // pred_fallthru
    _
  // Predicated region
  $region10: #{tpu_custom_call.1} parent=0 // pred_check
    _
  $region11: #{tpu_custom_call.1} parent=0 // pred_check_branch
    %13 = sbr.rel (0) target = $region13
  $region12: #{tpu_custom_call.1} parent=0 // pred_region
    _
  $region13: #{tpu_custom_call.1} parent=0 // pred_fallthru
    _
  %p14 = scmp.eq.s32.totalorder 0, 0
  // Predicated region
  $region14: #{tpu_custom_call.1} parent=0 // pred_check
    %p15 = pneg %p14
  $region15: #{tpu_custom_call.1} parent=0 // pred_check_branch
    %17 = sbr.rel (%p15) target = $region17
  $region16: #{tpu_custom_call.1} parent=0 // pred_region
    %vm18 = vcmask 7168
    %19 = vst.msk [vmem:[%s3] sm:$0xff] %vm18, 0.0
    %20 = vst.msk [vmem:[%s3 + $0x8] sm:$0xff] %vm18, 0.0
  $region17: #{tpu_custom_call.1} parent=0 // pred_fallthru
    _
  %v21 = vld [vmem:[%s0] sm:$0xff]
  %v22 = vld [vmem:[%s0 + $0x8] sm:$0xff]
  %v23 = vld [vmem:[%s1] sm:$0xff]
  %v24 = vld [vmem:[%s1 + $0x8] sm:$0xff]
  %s25 = smul.u32 0, 32
  %v26 = vstv %s25
  %v27 = vsub.s32 %v23, %v26
  %v28 = vsub.s32 %v24, %v26
  %v29 = vlaneseq
  %v30 = vand.u32 %v29, 127
  %31 = vset.pattern.permute.xlu0 0
  %32 = vperm.xlu0 %31, %v27
  %v33 = vpop.permute.xlu0 %32
  %34 = vset.pattern.permute.xlu0 0
  %35 = vperm.xlu0 %34, %v28
  %v36 = vpop.permute.xlu0 %35
  %vm37 = vcmp.eq.s32.totalorder %v30, %v33
  %vm38 = vcmp.eq.s32.totalorder %v30, %v36
  %v39 = vsel %vm37, %v21, 0.0
  %v40 = vsel %vm38, %v22, 0.0
  %vm41 = vcmask 261120
  %v42 = vsel %vm41, %v39, 0.0
  %43 = vadd.xlane.f32.xlu0 %v42
  %v44 = vpop.xlane.xlu0 %43
  %v45 = vsel %vm41, %v40, 0.0
  %46 = vadd.xlane.f32.xlu0 %v45
  %v47 = vpop.xlane.xlu0 %46
  %s48 = smul.u32 0, 16
  %v49 = vlaneseq
  %v50 = vshrl.u32 %v49, 7
  %v51 = vadd.s32 %v50, 8
  %v52 = vstv %s48
  %v53 = vadd.s32 %v52, %v50
  %v54 = vadd.s32 %v52, %v51
  %vm55 = vcmp.lt.s32.totalorder %v53, 16
  %vm56 = vcmp.lt.s32.totalorder %v54, 16
  %v57 = vld [vmem:[%s3] sm:$0xff]
  %v58 = vld [vmem:[%s3 + $0x8] sm:$0xff]
  %v59 = vsub.f32 0.0, %v44
  %v60 = vsub.f32 0.0, %v47
  %v61 = vld [vmem:[%s2] sm:$0xff]
  %v62 = vld [vmem:[%s2 + $0x8] sm:$0xff]
  %v63 = vmul.f32 %v59, %v61
  %v64 = vmul.f32 %v60, %v62
  %v65 = vsel %vm55, %v63, 0.0
  %v66 = vsel %vm56, %v64, 0.0
  %v67 = vadd.f32 %v57, %v65
  %v68 = vadd.f32 %v58, %v66
  %vm69 = vcmask 7168
  %70 = vst.msk [vmem:[%s3] sm:$0xff] %vm69, %v67
  %71 = vst.msk [vmem:[%s3 + $0x8] sm:$0xff] %vm69, %v68
  // Predicated region
  $region18: #{tpu_custom_call.1} parent=0 // pred_check
    _
  $region19: #{tpu_custom_call.1} parent=0 // pred_check_branch
    %73 = sbr.rel (0) target = $region21
  $region20: #{tpu_custom_call.1} parent=0 // pred_region
    _
  $region21: #{tpu_custom_call.1} parent=0 // pred_fallthru
    _
  // Predicated region
  $region22: #{tpu_custom_call.1} parent=0 // pred_check
    _
  $region23: #{tpu_custom_call.1} parent=0 // pred_check_branch
    %75 = sbr.rel (0) target = $region25
  $region24: #{tpu_custom_call.1} parent=0 // pred_region
    _
  $region25: #{tpu_custom_call.1} parent=0 // pred_fallthru
    _

</llo_original>
